<compile_context>
chip_gen: v6e
topology: v6e:2x2x1
jax: 0.10.0
libtpu: 0.0.40
codegen_flags: <defaults>
</compile_context>

<pallas_src>
import functools

import numpy as np
import jax
import jax.numpy as jnp
from jax import lax
from jax.experimental import pallas as pl
from jax.experimental.pallas import tpu as pltpu


# ----------------------------- Pallas kernel -------------------------------
def _res_block_kernel(xc_ref, xt_ref, xb_ref, w1_ref, b1_ref, w3_ref, b3_ref,
                      o_ref, *, block_h):
    # xc_ref : (1, TH, W*C)        center row-block of x (also the residual)
    # xt_ref : (1, 1, 1, W*C)      row just above the block (clamped at border)
    # xb_ref : (1, 1, 1, W*C)      row just below the block (clamped at border)
    # w1_ref : (W*C, (W+2)*Ch)     bf16 block-diag folded 1x1 weight (emits W pad)
    # b1_ref : (1, (W+2)*Ch)       f32 folded 1x1 bias (zero in W-pad columns)
    # w3_ref : (3, (W+2)*Ch, W*C)  bf16 banded folded 3x3 weight, one per h-tap
    # b3_ref : (1, W*C)            f32 folded 3x3 bias
    # o_ref  : (1, TH, W*C)
    TH = block_h
    hb = pl.program_id(1)
    n_hb = pl.num_programs(1)

    xc = xc_ref[0]                                     # (TH, W*C) f32
    xt = xt_ref[0, 0]                                  # (1,  W*C)
    xb = xb_ref[0, 0]                                  # (1,  W*C)
    x_halo = jnp.concatenate([xt, xc, xb], axis=0)     # (TH+2, W*C)

    # -- 1x1 conv (+folded BN) + ReLU: one MXU matmul; the block-diagonal
    #    weight produces the hidden row already width-padded (zero columns).
    y = jnp.dot(x_halo.astype(jnp.bfloat16), w1_ref[...],
                preferred_element_type=jnp.float32)
    y = jnp.maximum(y + b1_ref[...], 0.0)              # (TH+2, (W+2)*Ch) f32

    # -- zero the H-padding halo rows at the image border (conv zero padding).
    row = lax.broadcasted_iota(jnp.int32, (TH + 2, 1), 0)
    is_pad = jnp.logical_or(jnp.logical_and(row == 0, hb == 0),
                            jnp.logical_and(row == TH + 1, hb == n_hb - 1))
    y = jnp.where(is_pad, 0.0, y).astype(jnp.bfloat16)

    # -- 3x3 conv (+folded BN) + ReLU: three banded matmuls (one per height
    #    tap), contraction depth (W+2)*Ch; f32 accumulation in the MXU.
    acc = jnp.dot(y[0:TH], w3_ref[0], preferred_element_type=jnp.float32)
    acc = acc + jnp.dot(y[1:TH + 1], w3_ref[1], preferred_element_type=jnp.float32)
    acc = acc + jnp.dot(y[2:TH + 2], w3_ref[2], preferred_element_type=jnp.float32)
    z = jnp.maximum(acc + b3_ref[...], 0.0)            # (TH, W*C) f32

    # -- drop_path is identity at inference; residual add in f32.
    o_ref[0] = xc + z


def res_block_pallas(x_rows, w1_slab, b1_row, w3_band, b3_row, *, block_h=8):
    """x_rows: (N, H, W*C) f32 in the lane-dense row-slab layout."""
    N, H, WC = x_rows.shape
    WCP = w1_slab.shape[1]
    assert H % block_h == 0, (H, block_h)
    assert block_h % 8 == 0 and WC % 128 == 0, (block_h, WC)
    n_hb = H // block_h
    x_rows4 = x_rows.reshape(N, H, 1, WC)              # metadata-only reshape

    flops = int(2 * N * ((H + 2 * n_hb) * WC * WCP + 3 * H * WCP * WC))
    bytes_accessed = int(4 * N * (H + 2 * n_hb) * WC      # x (+ halo rows)
                         + 4 * N * H * WC                  # out
                         + 2 * (w1_slab.size + w3_band.size)
                         + 4 * (b1_row.size + b3_row.size))

    return pl.pallas_call(
        functools.partial(_res_block_kernel, block_h=block_h),
        out_shape=jax.ShapeDtypeStruct((N, H, WC), jnp.float32),
        grid=(N, n_hb),
        in_specs=[
            # center rows: read once, used for both the 1x1 conv and residual
            pl.BlockSpec((1, block_h, WC), lambda n, h: (n, h, 0)),
            # 1-row halos (border-clamped index_map; masked in-kernel)
            pl.BlockSpec((1, 1, 1, WC),
                         lambda n, h: (n, jnp.maximum(h * block_h - 1, 0), 0, 0)),
            pl.BlockSpec((1, 1, 1, WC),
                         lambda n, h: (n, jnp.minimum(h * block_h + block_h, H - 1),
                                       0, 0)),
            # weights / biases: constant index maps -> fetched once, stay resident
            pl.BlockSpec((WC, WCP), lambda n, h: (0, 0)),
            pl.BlockSpec((1, WCP), lambda n, h: (0, 0)),
            pl.BlockSpec((3, WCP, WC), lambda n, h: (0, 0, 0)),
            pl.BlockSpec((1, WC), lambda n, h: (0, 0)),
        ],
        out_specs=pl.BlockSpec((1, block_h, WC), lambda n, h: (n, h, 0)),
        compiler_params=pltpu.CompilerParams(
            # Both grid axes are independent -> megacore-shardable on v7x.
            dimension_semantics=("parallel", "parallel"),
            # Per-step working set here is < 0.5 MiB; 32 MiB is ample and stays
            # at half of v7x's 64 MiB physical VMEM.
            vmem_limit_bytes=32 * 1024 * 1024),
        cost_estimate=pl.CostEstimate(flops=flops, transcendentals=0,
                                      bytes_accessed=bytes_accessed),
    )(x_rows, x_rows4, x_rows4, w1_slab, b1_row, w3_band, b3_row)


# ------------------------ parameter setup (plain JAX) ----------------------
def _fold_bn(w_oihw, b_o, gamma, beta, mean, var, eps=1e-5):
    """Fold BatchNorm (eval) into conv weight/bias. w_oihw: (Co, Ci, kh, kw)."""
    scale = gamma / jnp.sqrt(var + eps)
    return w_oihw * scale[:, None, None, None], beta + scale * (b_o - mean)


def make_params(key, img_channel):
    C, Ch = img_channel, img_channel // 2
    ks = jax.random.split(key, 10)
    w1 = jax.random.normal(ks[0], (Ch, C, 1, 1), jnp.float32) * 0.1
    b1 = jax.random.normal(ks[1], (Ch,), jnp.float32) * 0.1
    g1 = 1.0 + 0.1 * jax.random.normal(ks[2], (Ch,), jnp.float32)
    be1 = 0.1 * jax.random.normal(ks[3], (Ch,), jnp.float32)
    m1 = 0.1 * jax.random.normal(ks[4], (Ch,), jnp.float32)
    v1 = 1.0 + 0.1 * jnp.abs(jax.random.normal(ks[5], (Ch,), jnp.float32))
    w3 = jax.random.normal(ks[6], (C, Ch, 3, 3), jnp.float32) * 0.1
    b3 = jax.random.normal(ks[7], (C,), jnp.float32) * 0.1
    g3 = 1.0 + 0.1 * jax.random.normal(ks[8], (C,), jnp.float32)
    be3 = 0.1 * jax.random.normal(ks[9], (C,), jnp.float32)
    m3 = jnp.zeros((C,), jnp.float32)
    v3 = jnp.ones((C,), jnp.float32)
    return dict(w1=w1, b1=b1, g1=g1, be1=be1, m1=m1, v1=v1,
                w3=w3, b3=b3, g3=g3, be3=be3, m3=m3, v3=v3)


def prepare_kernel_params(p, W):
    """Fold BN and build the lane-dense row-slab weights the kernel consumes.

    Slab packing is done host-side in numpy (one device upload per array)."""
    C, Ch = p["w3"].shape[0], p["w1"].shape[0]
    w1f, b1f = _fold_bn(p["w1"], p["b1"], p["g1"], p["be1"], p["m1"], p["v1"])
    w3f, b3f = _fold_bn(p["w3"], p["b3"], p["g3"], p["be3"], p["m3"], p["v3"])
    w1_ck = jnp.transpose(w1f[:, :, 0, 0], (1, 0))      # (C, Ch)    [ci, co]
    w3_k = jnp.transpose(w3f, (2, 3, 1, 0))             # (3,3,Ch,C) [dh,dw,ci,co]

    w1_np = np.asarray(w1_ck)
    w3_np = np.asarray(w3_k)
    b1_np = np.asarray(b1f)
    b3_np = np.asarray(b3f)

    WC, WCP = W * C, (W + 2) * Ch
    # 1x1 conv as a block-diagonal (W*C, (W+2)*Ch) matrix; the first/last Ch
    # output columns stay zero so the matmul emits the W zero padding directly.
    w1_slab = np.zeros((WC, WCP), np.float32)
    for w in range(W):
        w1_slab[w * C:(w + 1) * C, (w + 1) * Ch:(w + 2) * Ch] = w1_np
    b1_row = np.zeros((1, WCP), np.float32)
    b1_row[0, Ch:(W + 1) * Ch] = np.tile(b1_np, W)

    # 3x3 conv as three banded ((W+2)*Ch, W*C) matrices, one per height tap.
    w3_band = np.zeros((3, WCP, WC), np.float32)
    for dh in range(3):
        for dw in range(3):
            for w in range(W):
                w3_band[dh, (w + dw) * Ch:(w + dw + 1) * Ch,
                        w * C:(w + 1) * C] = w3_np[dh, dw]
    b3_row = np.tile(b3_np, W).reshape(1, WC)

    kernel_params = (jnp.asarray(w1_slab, dtype=jnp.bfloat16),
                     jnp.asarray(b1_row, dtype=jnp.float32),
                     jnp.asarray(w3_band, dtype=jnp.bfloat16),
                     jnp.asarray(b3_row, dtype=jnp.float32))
    ref_params = (w1_ck, b1f, w3_k, b3f)                # plain folded f32 params
    return kernel_params, ref_params


# ------------------------------ reference ----------------------------------
def res_block_ref(x_nhwc, w1_ck, b1, w3_k, b3):
    """Pure-JAX f32 reference (lax.conv, NHWC) with the same folded parameters."""
    C, Ch = x_nhwc.shape[-1], w1_ck.shape[1]
    w1_hwio = w1_ck.reshape(1, 1, C, Ch)
    dn1 = lax.conv_dimension_numbers(x_nhwc.shape, w1_hwio.shape,
                                     ("NHWC", "HWIO", "NHWC"))
    y = lax.conv_general_dilated(x_nhwc, w1_hwio, (1, 1), "SAME",
                                 dimension_numbers=dn1)
    y = jnp.maximum(y + b1.reshape(1, 1, 1, Ch), 0.0)
    dn3 = lax.conv_dimension_numbers(y.shape, w3_k.shape,
                                     ("NHWC", "HWIO", "NHWC"))
    z = lax.conv_general_dilated(y, w3_k, (1, 1), "SAME",
                                 dimension_numbers=dn3)
    z = jnp.maximum(z + b3.reshape(1, 1, 1, C), 0.0)
    return x_nhwc + z


# --------------------------------- main -------------------------------------
if __name__ == "__main__":
    N, C, H, W = 2, 8, 16, 16           # W*C = 128 -> exactly lane-dense rows
    drop_path_ratio = 0.1  # TODO(synk): training-mode stochastic depth not modeled; eval-mode drop_path is identity.

    key = jax.random.PRNGKey(0)
    kx, kp = jax.random.split(key)
    x_nchw = jax.random.normal(kx, (N, C, H, W), jnp.float32)

    params = make_params(kp, C)
    (w1_slab, b1_row, w3_band, b3_row), (w1_ck, b1f, w3_k, b3f) = \
        prepare_kernel_params(params, W)

    # NCHW (PyTorch) -> NHWC -> lane-dense row-slab (N, H, W*C)
    x_nhwc = jnp.transpose(x_nchw, (0, 2, 3, 1))
    x_rows = x_nhwc.reshape(N, H, W * C)

    out_rows = res_block_pallas(x_rows, w1_slab, b1_row, w3_band, b3_row,
                                block_h=8)
    out_rows = jax.block_until_ready(out_rows)
    out_nhwc = out_rows.reshape(N, H, W, C)

    ref_nhwc = res_block_ref(x_nhwc, w1_ck, b1f, w3_k, b3f)
    max_err = float(jnp.max(jnp.abs(out_nhwc - ref_nhwc)))
    # bf16 matmul operands vs. an all-f32 reference -> tolerance a bit loose.
    assert jnp.allclose(out_nhwc, ref_nhwc, atol=5e-2, rtol=5e-2), max_err

    # Back to NCHW to match the PyTorch module's output convention.
    out_nchw = jnp.transpose(out_nhwc, (0, 3, 1, 2))
    assert out_nchw.shape == x_nchw.shape

    print("KERNEL_OK")
</pallas_src>

<mosaic_0001>
module attributes {stable_mosaic.version = 11 : i64} {
  func.func @_res_block_kernel(%arg0: i32, %arg1: i32, %arg2: memref<1x8x128xf32, #tpu.memory_space<vmem>>, %arg3: memref<1x1x1x128xf32, #tpu.memory_space<vmem>>, %arg4: memref<1x1x1x128xf32, #tpu.memory_space<vmem>>, %arg5: memref<128x72xbf16, #tpu.memory_space<vmem>>, %arg6: memref<1x72xf32, #tpu.memory_space<vmem>>, %arg7: memref<3x72x128xbf16, #tpu.memory_space<vmem>>, %arg8: memref<1x128xf32, #tpu.memory_space<vmem>>, %arg9: memref<1x8x128xf32, #tpu.memory_space<vmem>>) attributes {dimension_semantics = [#tpu.dimension_semantics<parallel>, #tpu.dimension_semantics<parallel>], iteration_bounds = array<i64: 2, 2>, scalar_prefetch = 0 : i64, scratch_operands = 0 : i64, tpu.core_type = #tpu.core_type<tc>, window_params = [{transform_indices = @transform_0, window_bounds = array<i64: 1, 8, 128>}, {transform_indices = @transform_1, window_bounds = array<i64: 1, 1, 1, 128>}, {transform_indices = @transform_2, window_bounds = array<i64: 1, 1, 1, 128>}, {pipeline_mode = #tpu.pipeline_mode<synchronous>, transform_indices = @transform_3, window_bounds = array<i64: 128, 72>}, {pipeline_mode = #tpu.pipeline_mode<synchronous>, transform_indices = @transform_4, window_bounds = array<i64: 1, 72>}, {pipeline_mode = #tpu.pipeline_mode<synchronous>, transform_indices = @transform_5, window_bounds = array<i64: 3, 72, 128>}, {pipeline_mode = #tpu.pipeline_mode<synchronous>, transform_indices = @transform_6, window_bounds = array<i64: 1, 128>}, {transform_indices = @transform_7, window_bounds = array<i64: 1, 8, 128>}]} {
    %c0 = arith.constant 0 : index
    %c0_0 = arith.constant 0 : index
    %c0_1 = arith.constant 0 : index
    %0 = vector.load %arg2[%c0, %c0_0, %c0_1] : memref<1x8x128xf32, #tpu.memory_space<vmem>>, vector<1x8x128xf32>
    %1 = vector.shape_cast %0 : vector<1x8x128xf32> to vector<8x128xf32>
    %c0_2 = arith.constant 0 : index
    %c0_3 = arith.constant 0 : index
    %c0_4 = arith.constant 0 : index
    %c0_5 = arith.constant 0 : index
    %2 = vector.load %arg3[%c0_2, %c0_3, %c0_4, %c0_5] : memref<1x1x1x128xf32, #tpu.memory_space<vmem>>, vector<1x1x1x128xf32>
    %3 = vector.shape_cast %2 : vector<1x1x1x128xf32> to vector<1x128xf32>
    %c0_6 = arith.constant 0 : index
    %c0_7 = arith.constant 0 : index
    %c0_8 = arith.constant 0 : index
    %c0_9 = arith.constant 0 : index
    %4 = vector.load %arg4[%c0_6, %c0_7, %c0_8, %c0_9] : memref<1x1x1x128xf32, #tpu.memory_space<vmem>>, vector<1x1x1x128xf32>
    %5 = vector.shape_cast %4 : vector<1x1x1x128xf32> to vector<1x128xf32>
    %6 = tpu.concatenate %3, %1, %5 in 0 : vector<1x128xf32>, vector<8x128xf32>, vector<1x128xf32> -> vector<10x128xf32>
    %7 = arith.truncf %6 : vector<10x128xf32> to vector<10x128xbf16>
    %c0_10 = arith.constant 0 : index
    %c0_11 = arith.constant 0 : index
    %8 = vector.load %arg5[%c0_10, %c0_11] : memref<128x72xbf16, #tpu.memory_space<vmem>>, vector<128x72xbf16>
    %cst = arith.constant dense<0.000000e+00> : vector<10x72xf32>
    %9 = tpu.matmul %7, %8, %cst {dimension_numbers = #tpu.dot_dimension_numbers<[1], [0], [0], [1], [0, 0, 1, 1], [], []>} : vector<10x128xbf16>, vector<128x72xbf16>, vector<10x72xf32> -> vector<10x72xf32>
    %c0_12 = arith.constant 0 : index
    %c0_13 = arith.constant 0 : index
    %10 = vector.load %arg6[%c0_12, %c0_13] : memref<1x72xf32, #tpu.memory_space<vmem>>, vector<1x72xf32>
    %11 = vector.broadcast %10 : vector<1x72xf32> to vector<10x72xf32>
    %12 = arith.addf %9, %11 : vector<10x72xf32>
    %cst_14 = arith.constant 0.000000e+00 : f32
    %13 = vector.broadcast %cst_14 : f32 to vector<10x72xf32>
    %14 = arith.maximumf %12, %13 : vector<10x72xf32>
    %15 = tpu.iota {dimensions = array<i32: 0>} : vector<10x1xi32>
    %c0_i32 = arith.constant 0 : i32
    %16 = vector.broadcast %c0_i32 : i32 to vector<10x1xi32>
    %17 = arith.cmpi eq, %15, %16 : vector<10x1xi32>
    %c0_i32_15 = arith.constant 0 : i32
    %18 = arith.cmpi eq, %arg1, %c0_i32_15 : i32
    %19 = vector.broadcast %18 : i1 to vector<10x1xi1>
    %20 = arith.andi %17, %19 : vector<10x1xi1>
    %c9_i32 = arith.constant 9 : i32
    %21 = vector.broadcast %c9_i32 : i32 to vector<10x1xi32>
    %22 = arith.cmpi eq, %15, %21 : vector<10x1xi32>
    %c1_i32 = arith.constant 1 : i32
    %23 = arith.cmpi eq, %arg1, %c1_i32 : i32
    %24 = vector.broadcast %23 : i1 to vector<10x1xi1>
    %25 = arith.andi %22, %24 : vector<10x1xi1>
    %26 = arith.ori %20, %25 : vector<10x1xi1>
    %cst_16 = arith.constant 0.000000e+00 : f32
    %27 = vector.shape_cast %26 : vector<10x1xi1> to vector<10x1xi1>
    %28 = vector.broadcast %27 : vector<10x1xi1> to vector<10x72xi1>
    %29 = vector.broadcast %cst_16 : f32 to vector<10x72xf32>
    %30 = arith.select %28, %29, %14 : vector<10x72xi1>, vector<10x72xf32>
    %31 = arith.truncf %30 : vector<10x72xf32> to vector<10x72xbf16>
    %32 = vector.extract_strided_slice %31 {offsets = [0, 0], sizes = [8, 72], strides = [1, 1]} : vector<10x72xbf16> to vector<8x72xbf16>
    %c0_17 = arith.constant 0 : index
    %c0_18 = arith.constant 0 : index
    %c0_19 = arith.constant 0 : index
    %33 = vector.load %arg7[%c0_17, %c0_18, %c0_19] : memref<3x72x128xbf16, #tpu.memory_space<vmem>>, vector<1x72x128xbf16>
    %34 = vector.shape_cast %33 : vector<1x72x128xbf16> to vector<72x128xbf16>
    %cst_20 = arith.constant dense<0.000000e+00> : vector<8x128xf32>
    %35 = tpu.matmul %32, %34, %cst_20 {dimension_numbers = #tpu.dot_dimension_numbers<[1], [0], [0], [1], [0, 0, 1, 1], [], []>} : vector<8x72xbf16>, vector<72x128xbf16>, vector<8x128xf32> -> vector<8x128xf32>
    %36 = vector.extract_strided_slice %31 {offsets = [1, 0], sizes = [8, 72], strides = [1, 1]} : vector<10x72xbf16> to vector<8x72xbf16>
    %c1 = arith.constant 1 : index
    %c0_21 = arith.constant 0 : index
    %c0_22 = arith.constant 0 : index
    %37 = vector.load %arg7[%c1, %c0_21, %c0_22] : memref<3x72x128xbf16, #tpu.memory_space<vmem>>, vector<1x72x128xbf16>
    %38 = vector.shape_cast %37 : vector<1x72x128xbf16> to vector<72x128xbf16>
    %cst_23 = arith.constant dense<0.000000e+00> : vector<8x128xf32>
    %39 = tpu.matmul %36, %38, %cst_23 {dimension_numbers = #tpu.dot_dimension_numbers<[1], [0], [0], [1], [0, 0, 1, 1], [], []>} : vector<8x72xbf16>, vector<72x128xbf16>, vector<8x128xf32> -> vector<8x128xf32>
    %40 = arith.addf %35, %39 : vector<8x128xf32>
    %41 = vector.extract_strided_slice %31 {offsets = [2, 0], sizes = [8, 72], strides = [1, 1]} : vector<10x72xbf16> to vector<8x72xbf16>
    %c2 = arith.constant 2 : index
    %c0_24 = arith.constant 0 : index
    %c0_25 = arith.constant 0 : index
    %42 = vector.load %arg7[%c2, %c0_24, %c0_25] : memref<3x72x128xbf16, #tpu.memory_space<vmem>>, vector<1x72x128xbf16>
    %43 = vector.shape_cast %42 : vector<1x72x128xbf16> to vector<72x128xbf16>
    %cst_26 = arith.constant dense<0.000000e+00> : vector<8x128xf32>
    %44 = tpu.matmul %41, %43, %cst_26 {dimension_numbers = #tpu.dot_dimension_numbers<[1], [0], [0], [1], [0, 0, 1, 1], [], []>} : vector<8x72xbf16>, vector<72x128xbf16>, vector<8x128xf32> -> vector<8x128xf32>
    %45 = arith.addf %40, %44 : vector<8x128xf32>
    %c0_27 = arith.constant 0 : index
    %c0_28 = arith.constant 0 : index
    %46 = vector.load %arg8[%c0_27, %c0_28] : memref<1x128xf32, #tpu.memory_space<vmem>>, vector<1x128xf32>
    %47 = vector.broadcast %46 : vector<1x128xf32> to vector<8x128xf32>
    %48 = arith.addf %45, %47 : vector<8x128xf32>
    %cst_29 = arith.constant 0.000000e+00 : f32
    %49 = vector.broadcast %cst_29 : f32 to vector<8x128xf32>
    %50 = arith.maximumf %48, %49 : vector<8x128xf32>
    %51 = arith.addf %1, %50 : vector<8x128xf32>
    %c0_30 = arith.constant 0 : index
    %c0_31 = arith.constant 0 : index
    %c0_32 = arith.constant 0 : index
    %52 = vector.load %arg9[%c0_30, %c0_31, %c0_32] : memref<1x8x128xf32, #tpu.memory_space<vmem>>, vector<1x8x128xf32>
    %53 = vector.shape_cast %52 : vector<1x8x128xf32> to vector<8x128xf32>
    %54 = vector.shape_cast %51 : vector<8x128xf32> to vector<1x8x128xf32>
    tpu.vector_store %arg9[%c0_30, %c0_31, %c0_32], %54 {strides = array<i32>} : memref<1x8x128xf32, #tpu.memory_space<vmem>>, vector<1x8x128xf32>,
    return
  }
  func.func @transform_0(%arg0: i32, %arg1: i32) -> (i32, i32, i32) {
    %c0_i32 = arith.constant 0 : i32
    %c0_i32_0 = arith.constant 0 : i32
    return %arg0, %arg1, %c0_i32 : i32, i32, i32
  }
  func.func @transform_1(%arg0: i32, %arg1: i32) -> (i32, i32, i32, i32) {
    %c8_i32 = arith.constant 8 : i32
    %0 = arith.muli %arg1, %c8_i32 : i32
    %c1_i32 = arith.constant 1 : i32
    %1 = arith.subi %0, %c1_i32 : i32
    %c0_i32 = arith.constant 0 : i32
    %2 = arith.maxsi %1, %c0_i32 : i32
    %c0_i32_0 = arith.constant 0 : i32
    %c0_i32_1 = arith.constant 0 : i32
    %c0_i32_2 = arith.constant 0 : i32
    return %arg0, %2, %c0_i32_0, %c0_i32_1 : i32, i32, i32, i32
  }
  func.func @transform_2(%arg0: i32, %arg1: i32) -> (i32, i32, i32, i32) {
    %c8_i32 = arith.constant 8 : i32
    %0 = arith.muli %arg1, %c8_i32 : i32
    %c8_i32_0 = arith.constant 8 : i32
    %1 = arith.addi %0, %c8_i32_0 : i32
    %c15_i32 = arith.constant 15 : i32
    %2 = arith.minsi %1, %c15_i32 : i32
    %c0_i32 = arith.constant 0 : i32
    %c0_i32_1 = arith.constant 0 : i32
    %c0_i32_2 = arith.constant 0 : i32
    return %arg0, %2, %c0_i32, %c0_i32_1 : i32, i32, i32, i32
  }
  func.func @transform_3(%arg0: i32, %arg1: i32) -> (i32, i32) {
    %c0_i32 = arith.constant 0 : i32
    %c0_i32_0 = arith.constant 0 : i32
    %c0_i32_1 = arith.constant 0 : i32
    return %c0_i32, %c0_i32_0 : i32, i32
  }
  func.func @transform_4(%arg0: i32, %arg1: i32) -> (i32, i32) {
    %c0_i32 = arith.constant 0 : i32
    %c0_i32_0 = arith.constant 0 : i32
    %c0_i32_1 = arith.constant 0 : i32
    return %c0_i32, %c0_i32_0 : i32, i32
  }
  func.func @transform_5(%arg0: i32, %arg1: i32) -> (i32, i32, i32) {
    %c0_i32 = arith.constant 0 : i32
    %c0_i32_0 = arith.constant 0 : i32
    %c0_i32_1 = arith.constant 0 : i32
    %c0_i32_2 = arith.constant 0 : i32
    return %c0_i32, %c0_i32_0, %c0_i32_1 : i32, i32, i32
  }
  func.func @transform_6(%arg0: i32, %arg1: i32) -> (i32, i32) {
    %c0_i32 = arith.constant 0 : i32
    %c0_i32_0 = arith.constant 0 : i32
    %c0_i32_1 = arith.constant 0 : i32
    return %c0_i32, %c0_i32_0 : i32, i32
  }
  func.func @transform_7(%arg0: i32, %arg1: i32) -> (i32, i32, i32) {
    %c0_i32 = arith.constant 0 : i32
    %c0_i32_0 = arith.constant 0 : i32
    return %arg0, %arg1, %c0_i32 : i32, i32, i32
  }
}

</mosaic_0001>

<llo_original>
// kernel: tpu_custom_call.1
$region0: #{tpu_custom_call.1}
  #allocation0 [shape = 'u32[]', space=smem, size = 0x4, offset = 0x4, fixed_abs, tag = 'smem constant byte address 0x4 - core index']
  #allocation1 [shape = 'u32[144,128]{1,0:T(1,128)}', space=vmem, size = 0x12000, scoped, tag = 'internal scratch']
  %s0 = inlined_call_operand.hbm [shape: f32[2,16,128], index: 0, kind: input, shape index: {}]
  %s1 = inlined_call_operand.hbm [shape: f32[2,16,1,128], index: 1, kind: input, shape index: {}]
  %s2 = inlined_call_operand.hbm [shape: f32[2,16,1,128], index: 2, kind: input, shape index: {}]
  %s3 = inlined_call_operand.vmem [shape: bf16[128,72], index: 3, kind: input, shape index: {}]
  %s4 = inlined_call_operand.vmem [shape: f32[1,72], index: 4, kind: input, shape index: {}]
  %s5 = inlined_call_operand.vmem [shape: bf16[3,72,128], index: 5, kind: input, shape index: {}]
  %s6 = inlined_call_operand.vmem [shape: f32[1,128], index: 6, kind: input, shape index: {}]
  %s7 = inlined_call_operand.hbm [shape: f32[2,16,128], index: 7, kind: output, shape index: {}]
  %s8 = sld [smem:[#allocation0]]
  $region73: #{tpu_custom_call.1} parent=0
    _
  %s10 = ssub.s32 1, %s8
  %s11 = scalar_select 0, %s10, %s8
  $region1: #{tpu_custom_call.1} parent=0
    #allocation2 [shape = 'u8[8192]{0}', space=vmem, size = 0x2000, scoped, tag = 'input window, operand 0']
    #allocation3 [shape = 's32[2]{0}', space=sflag, size = 0x8, scoped, tag = 'scoped memory for tpu_custom_call.1']
    #allocation4 [shape = 's32[2]{0}', space=sflag, size = 0x8, scoped, tag = 'scoped memory for tpu_custom_call.1']
    #allocation5 [shape = 'u8[1024]{0}', space=vmem, size = 0x400, scoped, tag = 'input window, operand 1']
    #allocation6 [shape = 's32[2]{0}', space=sflag, size = 0x8, scoped, tag = 'scoped memory for tpu_custom_call.1']
    #allocation7 [shape = 'u8[1024]{0}', space=vmem, size = 0x400, scoped, tag = 'input window, operand 2']
    #allocation8 [shape = 'u8[8192]{0}', space=vmem, size = 0x2000, scoped, tag = 'output window, operand 0']
    %12 = vsyncpa [#allocation3], 0
    %s13 = scalar_lea.sflag [#allocation3], 1
    %14 = vsyncpa %s13, 0
    %15 = vsyncpa [#allocation6], 0
    %s16 = scalar_lea.sflag [#allocation6], 1
    %17 = vsyncpa %s16, 0
    %18 = vsyncpa [#allocation4], 0
    %s19 = scalar_lea.sflag [#allocation4], 1
    %20 = vsyncpa %s19, 0
    loop: start=0, step=1, limit=6
    $region2: #{tpu_custom_call.1} parent=1 // loop_pre_header
      _
    $region3: #{tpu_custom_call.1} parent=1 // loop_header
      %s22 = sphi 0, %s26
      %p23 = scmp.ge.s32.totalorder %s22, 6
      %s29 = sphi 0, %s41
      %s30 = sphi 0, %s37
      %s31 = sphi 0, %s29
      %s32 = sphi 0, %s30
      %s33 = sphi 0, %s31
      %s34 = sphi 0, %s32
      %s46 = sphi 0, %s48
      %s49 = sphi 0, %s46
      %s50 = sphi 0, %s49
      %s66 = sphi 0, %s50
      %s82 = sphi 0, %s84
      %s85 = sphi 0, %s82
      %s86 = sphi 0, %s85
      %s102 = sphi 0, %s86
      %s118 = sphi 0, %s120
      %s121 = sphi 0, %s118
      %s122 = sphi 0, %s121
      %s138 = sphi 0, %s122
      %s142 = sphi 0, %s142
      %s144 = sphi 0, %s142
      %s145 = sphi 0, %s144
      %s159 = sphi 0, %s145
      %s163 = sphi 0, %s163
      %s165 = sphi 0, %s163
      %s166 = sphi 0, %s165
      %s180 = sphi 0, %s166
      %s184 = sphi 0, %s184
      %s186 = sphi 0, %s184
      %s187 = sphi 0, %s186
      %s201 = sphi 0, %s187
      %s205 = sphi 0, %s205
      %s207 = sphi 0, %s205
      %s208 = sphi 0, %s207
      %s222 = sphi 0, %s208
      %s230 = sphi 0, %s232
      %s233 = sphi 0, %s230
      %s234 = sphi 0, %s233
      %s250 = sphi 0, %s234
    $region4: #{tpu_custom_call.1} parent=1 // loop_header_branch
      %25 = sbr.rel (%p23) target = $region8
    $region5: #{tpu_custom_call.1} parent=1 // loop_body
      %s27 = ssub.s32 %s22, 1
      %s28 = ssub.s32 %s22, 2
      %s35 = sadd.s32 1, %s30
      %p36 = scmp.ge.s32.totalorder %s35, 2
      %s37 = scalar_select %p36, 0, %s35
      %s38 = sadd.s32 1, %s29
      %s39 = scalar_select %p36, %s38, %s29
      %p40 = scmp.ge.s32.totalorder %s39, 2
      %s41 = scalar_select %p40, 0, %s39
      %s42 = ssub.s32 %s29, %s41
      %s43 = ssub.s32 %s30, %s37
      %s44 = sor.u32 %s42, %s43
      %p45 = scmp.eq.s32.totalorder %s44, 0
      %s47 = sadd.s32 %s46, 1
      %s48 = scalar_select %p45, %s46, %s47
      %p51 = pneg %p45
      %p52 = scmp.eq.s32.totalorder %s22, 3
      %p53 = por %p51, %p52
      %p54 = scmp.ne.s32.totalorder %s46, %s49
      %p55 = scmp.eq.s32.totalorder %s22, 0
      %p56 = por %p54, %p55
      %p57 = scmp.ne.s32.totalorder %s46, %s49
      %p58 = scmp.eq.s32.totalorder %s27, 3
      %p59 = por %p57, %p58
      %p60 = scmp.ne.s32.totalorder %s49, %s50
      %p61 = scmp.eq.s32.totalorder %s27, 0
      %p62 = por %p60, %p61
      %p63 = scmp.ne.s32.totalorder %s49, %s50
      %p64 = scmp.eq.s32.totalorder %s28, 3
      %p65 = por %p63, %p64
      %p67 = scmp.ne.s32.totalorder %s50, %s66
      %p68 = scmp.eq.s32.totalorder %s28, 0
      %p69 = por %p67, %p68
      %s70 = smul.u32 %s30, 8
      %s71 = ssub.s32 %s70, 1
      %p72 = scmp.gt.s32.totalorder %s71, 0
      %s73 = scalar_select %p72, %s71, 0
      %s74 = smul.u32 %s37, 8
      %s75 = ssub.s32 %s74, 1
      %p76 = scmp.gt.s32.totalorder %s75, 0
      %s77 = scalar_select %p76, %s75, 0
      %s78 = ssub.s32 %s29, %s41
      %s79 = ssub.s32 %s73, %s77
      %s80 = sor.u32 %s78, %s79
      %p81 = scmp.eq.s32.totalorder %s80, 0
      %s83 = sadd.s32 %s82, 1
      %s84 = scalar_select %p81, %s82, %s83
      %p87 = pneg %p81
      %p88 = scmp.eq.s32.totalorder %s22, 3
      %p89 = por %p87, %p88
      %p90 = scmp.ne.s32.totalorder %s82, %s85
      %p91 = scmp.eq.s32.totalorder %s22, 0
      %p92 = por %p90, %p91
      %p93 = scmp.ne.s32.totalorder %s82, %s85
      %p94 = scmp.eq.s32.totalorder %s27, 3
      %p95 = por %p93, %p94
      %p96 = scmp.ne.s32.totalorder %s85, %s86
      %p97 = scmp.eq.s32.totalorder %s27, 0
      %p98 = por %p96, %p97
      %p99 = scmp.ne.s32.totalorder %s85, %s86
      %p100 = scmp.eq.s32.totalorder %s28, 3
      %p101 = por %p99, %p100
      %p103 = scmp.ne.s32.totalorder %s86, %s102
      %p104 = scmp.eq.s32.totalorder %s28, 0
      %p105 = por %p103, %p104
      %s106 = smul.u32 %s30, 8
      %s107 = sadd.s32 %s106, 8
      %p108 = scmp.lt.s32.totalorder %s107, 15
      %s109 = scalar_select %p108, %s107, 15
      %s110 = smul.u32 %s37, 8
      %s111 = sadd.s32 %s110, 8
      %p112 = scmp.lt.s32.totalorder %s111, 15
      %s113 = scalar_select %p112, %s111, 15
      %s114 = ssub.s32 %s29, %s41
      %s115 = ssub.s32 %s109, %s113
      %s116 = sor.u32 %s114, %s115
      %p117 = scmp.eq.s32.totalorder %s116, 0
      %s119 = sadd.s32 %s118, 1
      %s120 = scalar_select %p117, %s118, %s119
      %p123 = pneg %p117
      %p124 = scmp.eq.s32.totalorder %s22, 3
      %p125 = por %p123, %p124
      %p126 = scmp.ne.s32.totalorder %s118, %s121
      %p127 = scmp.eq.s32.totalorder %s22, 0
      %p128 = por %p126, %p127
      %p129 = scmp.ne.s32.totalorder %s118, %s121
      %p130 = scmp.eq.s32.totalorder %s27, 3
      %p131 = por %p129, %p130
      %p132 = scmp.ne.s32.totalorder %s121, %s122
      %p133 = scmp.eq.s32.totalorder %s27, 0
      %p134 = por %p132, %p133
      %p135 = scmp.ne.s32.totalorder %s121, %s122
      %p136 = scmp.eq.s32.totalorder %s28, 3
      %p137 = por %p135, %p136
      %p139 = scmp.ne.s32.totalorder %s122, %s138
      %p140 = scmp.eq.s32.totalorder %s28, 0
      %p141 = por %p139, %p140
      %s143 = sadd.s32 %s142, 1
      %p146 = scmp.eq.s32.totalorder %s22, 3
      %p147 = scmp.ne.s32.totalorder %s142, %s144
      %p148 = scmp.eq.s32.totalorder %s22, 0
      %p149 = por %p147, %p148
      %p150 = scmp.ne.s32.totalorder %s142, %s144
      %p151 = scmp.eq.s32.totalorder %s27, 3
      %p152 = por %p150, %p151
      %p153 = scmp.ne.s32.totalorder %s144, %s145
      %p154 = scmp.eq.s32.totalorder %s27, 0
      %p155 = por %p153, %p154
      %p156 = scmp.ne.s32.totalorder %s144, %s145
      %p157 = scmp.eq.s32.totalorder %s28, 3
      %p158 = por %p156, %p157
      %p160 = scmp.ne.s32.totalorder %s145, %s159
      %p161 = scmp.eq.s32.totalorder %s28, 0
      %p162 = por %p160, %p161
      %s164 = sadd.s32 %s163, 1
      %p167 = scmp.eq.s32.totalorder %s22, 3
      %p168 = scmp.ne.s32.totalorder %s163, %s165
      %p169 = scmp.eq.s32.totalorder %s22, 0
      %p170 = por %p168, %p169
      %p171 = scmp.ne.s32.totalorder %s163, %s165
      %p172 = scmp.eq.s32.totalorder %s27, 3
      %p173 = por %p171, %p172
      %p174 = scmp.ne.s32.totalorder %s165, %s166
      %p175 = scmp.eq.s32.totalorder %s27, 0
      %p176 = por %p174, %p175
      %p177 = scmp.ne.s32.totalorder %s165, %s166
      %p178 = scmp.eq.s32.totalorder %s28, 3
      %p179 = por %p177, %p178
      %p181 = scmp.ne.s32.totalorder %s166, %s180
      %p182 = scmp.eq.s32.totalorder %s28, 0
      %p183 = por %p181, %p182
      %s185 = sadd.s32 %s184, 1
      %p188 = scmp.eq.s32.totalorder %s22, 3
      %p189 = scmp.ne.s32.totalorder %s184, %s186
      %p190 = scmp.eq.s32.totalorder %s22, 0
      %p191 = por %p189, %p190
      %p192 = scmp.ne.s32.totalorder %s184, %s186
      %p193 = scmp.eq.s32.totalorder %s27, 3
      %p194 = por %p192, %p193
      %p195 = scmp.ne.s32.totalorder %s186, %s187
      %p196 = scmp.eq.s32.totalorder %s27, 0
      %p197 = por %p195, %p196
      %p198 = scmp.ne.s32.totalorder %s186, %s187
      %p199 = scmp.eq.s32.totalorder %s28, 3
      %p200 = por %p198, %p199
      %p202 = scmp.ne.s32.totalorder %s187, %s201
      %p203 = scmp.eq.s32.totalorder %s28, 0
      %p204 = por %p202, %p203
      %s206 = sadd.s32 %s205, 1
      %p209 = scmp.eq.s32.totalorder %s22, 3
      %p210 = scmp.ne.s32.totalorder %s205, %s207
      %p211 = scmp.eq.s32.totalorder %s22, 0
      %p212 = por %p210, %p211
      %p213 = scmp.ne.s32.totalorder %s205, %s207
      %p214 = scmp.eq.s32.totalorder %s27, 3
      %p215 = por %p213, %p214
      %p216 = scmp.ne.s32.totalorder %s207, %s208
      %p217 = scmp.eq.s32.totalorder %s27, 0
      %p218 = por %p216, %p217
      %p219 = scmp.ne.s32.totalorder %s207, %s208
      %p220 = scmp.eq.s32.totalorder %s28, 3
      %p221 = por %p219, %p220
      %p223 = scmp.ne.s32.totalorder %s208, %s222
      %p224 = scmp.eq.s32.totalorder %s28, 0
      %p225 = por %p223, %p224
      %s226 = ssub.s32 %s29, %s41
      %s227 = ssub.s32 %s30, %s37
      %s228 = sor.u32 %s226, %s227
      %p229 = scmp.eq.s32.totalorder %s228, 0
      %s231 = sadd.s32 %s230, 1
      %s232 = scalar_select %p229, %s230, %s231
      %p235 = pneg %p229
      %p236 = scmp.eq.s32.totalorder %s22, 3
      %p237 = por %p235, %p236
      %p238 = scmp.ne.s32.totalorder %s230, %s233
      %p239 = scmp.eq.s32.totalorder %s22, 0
      %p240 = por %p238, %p239
      %p241 = scmp.ne.s32.totalorder %s230, %s233
      %p242 = scmp.eq.s32.totalorder %s27, 3
      %p243 = por %p241, %p242
      %p244 = scmp.ne.s32.totalorder %s233, %s234
      %p245 = scmp.eq.s32.totalorder %s27, 0
      %p246 = por %p244, %p245
      %p247 = scmp.ne.s32.totalorder %s233, %s234
      %p248 = scmp.eq.s32.totalorder %s28, 3
      %p249 = por %p247, %p248
      %p251 = scmp.ne.s32.totalorder %s234, %s250
      %p252 = scmp.eq.s32.totalorder %s28, 0
      %p253 = por %p251, %p252
      %p254 = scmp.le.s32.totalorder 1, %s22
      %p255 = scmp.lt.s32.totalorder %s22, 5
      %p256 = pnand %p254, %p255
      %p257 = pneg %p256
      // Predicated region
      $region9: #{tpu_custom_call.1} parent=5 // pred_check
        _
      $region10: #{tpu_custom_call.1} parent=5 // pred_check_branch
        %259 = sbr.rel (%p256) target = $region12
      $region11: #{tpu_custom_call.1} parent=5 // pred_region
        %s260 = ssub.s32 %s22, 1
        // Predicated region
        $region13: #{tpu_custom_call.1} parent=11 // pred_check
          %p261 = pneg %p155
        $region14: #{tpu_custom_call.1} parent=11 // pred_check_branch
          %263 = sbr.rel (%p261) target = $region16
        $region15: #{tpu_custom_call.1} parent=11 // pred_region
          _
        $region16: #{tpu_custom_call.1} parent=11 // pred_fallthru
          _
        // Predicated region
        $region17: #{tpu_custom_call.1} parent=11 // pred_check
          %p264 = pneg %p176
        $region18: #{tpu_custom_call.1} parent=11 // pred_check_branch
          %266 = sbr.rel (%p264) target = $region20
        $region19: #{tpu_custom_call.1} parent=11 // pred_region
          _
        $region20: #{tpu_custom_call.1} parent=11 // pred_fallthru
          _
        // Predicated region
        $region21: #{tpu_custom_call.1} parent=11 // pred_check
          %p267 = pneg %p197
        $region22: #{tpu_custom_call.1} parent=11 // pred_check_branch
          %269 = sbr.rel (%p267) target = $region24
        $region23: #{tpu_custom_call.1} parent=11 // pred_region
          _
        $region24: #{tpu_custom_call.1} parent=11 // pred_fallthru
          _
        // Predicated region
        $region25: #{tpu_custom_call.1} parent=11 // pred_check
          %p270 = pneg %p218
        $region26: #{tpu_custom_call.1} parent=11 // pred_check_branch
          %272 = sbr.rel (%p270) target = $region28
        $region27: #{tpu_custom_call.1} parent=11 // pred_region
          _
        $region28: #{tpu_custom_call.1} parent=11 // pred_fallthru
          _
      $region12: #{tpu_custom_call.1} parent=5 // pred_fallthru
        _
      %p273 = scmp.lt.s32.totalorder %s22, 4
      // Predicated region
      $region29: #{tpu_custom_call.1} parent=5 // pred_check
        %p274 = pneg %p273
      $region30: #{tpu_custom_call.1} parent=5 // pred_check_branch
        %276 = sbr.rel (%p274) target = $region32
      $region31: #{tpu_custom_call.1} parent=5 // pred_region
        // Predicated region
        $region33: #{tpu_custom_call.1} parent=31 // pred_check
          %p277 = pneg %p56
        $region34: #{tpu_custom_call.1} parent=31 // pred_check_branch
          %279 = sbr.rel (%p277) target = $region36
        $region35: #{tpu_custom_call.1} parent=31 // pred_region
          %s280 = sand.u32 %s46, 1
          %s281 = scalar_lea.sflag [#allocation3], %s280
          %s282 = sand.u32 %s46, 1
          %s283 = smul.addr %s282, 8
          %s284 = scalar_lea.vmem [#allocation2], %s283
          %s286 = ssub.s32 128, 128
          %287 = vsyncadd %s281, %s286
          %s288 = smul.addr %s29, 2
          %s289 = sadd.s32 %s30, %s288
          %s290 = smul.addr %s289, 128
          %s291 = scalar_lea.hbm %s0, %s290
          %s293 = sshll.u32 %s284, 4
          %s294 = int_to_ptr.vmem [resolvable:$true] %s293
          %296 = dma.hbm_to_vmem [thread:$0]  %s291, 128, %s294, %s281
        $region36: #{tpu_custom_call.1} parent=31 // pred_fallthru
          _
        // Predicated region
        $region37: #{tpu_custom_call.1} parent=31 // pred_check
          %p297 = pneg %p92
        $region38: #{tpu_custom_call.1} parent=31 // pred_check_branch
          %299 = sbr.rel (%p297) target = $region40
        $region39: #{tpu_custom_call.1} parent=31 // pred_region
          %s300 = sand.u32 %s22, 1
          %s301 = scalar_lea.sflag [#allocation6], %s300
          %s302 = sand.u32 %s82, 1
          %s303 = scalar_lea.vmem [#allocation5], %s302
          %s304 = smul.u32 %s30, 8
          %s305 = ssub.s32 %s304, 1
          %p306 = scmp.gt.s32.totalorder %s305, 0
          %s307 = scalar_select %p306, %s305, 0
          %s309 = ssub.s32 16, 16
          %310 = vsyncadd %s301, %s309
          %s311 = smul.addr %s29, 16
          %s312 = sadd.s32 %s307, %s311
          %s313 = smul.addr %s312, 16
          %s314 = scalar_lea.hbm %s1, %s313
          %s316 = sshll.u32 %s303, 4
          %s317 = int_to_ptr.vmem [resolvable:$true] %s316
          %319 = dma.hbm_to_vmem [thread:$0]  %s314, 16, %s317, %s301
        $region40: #{tpu_custom_call.1} parent=31 // pred_fallthru
          _
        // Predicated region
        $region41: #{tpu_custom_call.1} parent=31 // pred_check
          %p320 = pneg %p128
        $region42: #{tpu_custom_call.1} parent=31 // pred_check_branch
          %322 = sbr.rel (%p320) target = $region44
        $region43: #{tpu_custom_call.1} parent=31 // pred_region
          %s323 = sand.u32 %s22, 1
          %s324 = scalar_lea.sflag [#allocation6], %s323
          %s325 = sand.u32 %s118, 1
          %s326 = scalar_lea.vmem [#allocation7], %s325
          %s327 = smul.u32 %s30, 8
          %s328 = sadd.s32 %s327, 8
          %p329 = scmp.lt.s32.totalorder %s328, 15
          %s330 = scalar_select %p329, %s328, 15
          %s332 = ssub.s32 16, 16
          %333 = vsyncadd %s324, %s332
          %s334 = smul.addr %s29, 16
          %s335 = sadd.s32 %s330, %s334
          %s336 = smul.addr %s335, 16
          %s337 = scalar_lea.hbm %s2, %s336
          %s339 = sshll.u32 %s326, 4
          %s340 = int_to_ptr.vmem [resolvable:$true] %s339
          %342 = dma.hbm_to_vmem [thread:$0]  %s337, 16, %s340, %s324
        $region44: #{tpu_custom_call.1} parent=31 // pred_fallthru
          _
      $region32: #{tpu_custom_call.1} parent=5 // pred_fallthru
        _
      %p343 = scmp.le.s32.totalorder 1, %s22
      %p344 = scmp.lt.s32.totalorder %s22, 5
      %p345 = pnand %p343, %p344
      %p346 = pneg %p345
      // Predicated region
      $region45: #{tpu_custom_call.1} parent=5 // pred_check
        _
      $region46: #{tpu_custom_call.1} parent=5 // pred_check_branch
        %348 = sbr.rel (%p345) target = $region48
      $region47: #{tpu_custom_call.1} parent=5 // pred_region
        %s349 = ssub.s32 %s22, 1
        %s350 = sand.u32 %s49, 1
        %s351 = scalar_lea.sflag [#allocation3], %s350
        %s352 = sand.u32 %s49, 1
        %s353 = smul.addr %s352, 8
        %s354 = scalar_lea.vmem [#allocation2], %s353
        // Predicated region
        $region49: #{tpu_custom_call.1} parent=47 // pred_check
          %p355 = pneg %p62
        $region50: #{tpu_custom_call.1} parent=47 // pred_check_branch
          %357 = sbr.rel (%p355) target = $region52
        $region51: #{tpu_custom_call.1} parent=47 // pred_region
          %358 = dma.done %s351, 128
        $region52: #{tpu_custom_call.1} parent=47 // pred_fallthru
          _
        %s359 = sand.u32 %s27, 1
        %s360 = scalar_lea.sflag [#allocation6], %s359
        %s361 = sand.u32 %s85, 1
        %s362 = scalar_lea.vmem [#allocation5], %s361
        // Predicated region
        $region53: #{tpu_custom_call.1} parent=47 // pred_check
          %p363 = pneg %p98
        $region54: #{tpu_custom_call.1} parent=47 // pred_check_branch
          %365 = sbr.rel (%p363) target = $region56
        $region55: #{tpu_custom_call.1} parent=47 // pred_region
          %366 = dma.done %s360, 16
        $region56: #{tpu_custom_call.1} parent=47 // pred_fallthru
          _
        %s367 = sand.u32 %s27, 1
        %s368 = scalar_lea.sflag [#allocation6], %s367
        %s369 = sand.u32 %s121, 1
        %s370 = scalar_lea.vmem [#allocation7], %s369
        // Predicated region
        $region57: #{tpu_custom_call.1} parent=47 // pred_check
          %p371 = pneg %p134
        $region58: #{tpu_custom_call.1} parent=47 // pred_check_branch
          %373 = sbr.rel (%p371) target = $region60
        $region59: #{tpu_custom_call.1} parent=47 // pred_region
          %374 = dma.done %s368, 16
        $region60: #{tpu_custom_call.1} parent=47 // pred_fallthru
          _
        %s375 = sand.u32 %s49, 1
        %s376 = scalar_lea.sflag [#allocation3], %s375
        %s377 = sand.u32 %s49, 1
        %s378 = smul.addr %s377, 8
        %s379 = scalar_lea.vmem [#allocation2], %s378
        %p380 = pneg %p62
        %p381 = pneg %p59
        %s382 = sand.u32 %s27, 1
        %s383 = scalar_lea.sflag [#allocation6], %s382
        %s384 = sand.u32 %s85, 1
        %s385 = scalar_lea.vmem [#allocation5], %s384
        %p386 = pneg %p98
        %p387 = pneg %p95
        %s388 = sand.u32 %s27, 1
        %s389 = scalar_lea.sflag [#allocation6], %s388
        %s390 = sand.u32 %s121, 1
        %s391 = scalar_lea.vmem [#allocation7], %s390
        %p392 = pneg %p134
        %p393 = pneg %p131
        %p394 = pneg %p155
        %p395 = pneg %p152
        %p396 = pneg %p176
        %p397 = pneg %p173
        %p398 = pneg %p197
        %p399 = pneg %p194
        %p400 = pneg %p218
        %p401 = pneg %p215
        %p402 = pneg %p246
        %p403 = pneg %p243
        %s404 = sand.u32 %s233, 1
        %s405 = scalar_lea.sflag [#allocation4], %s404
        %s406 = sand.u32 %s233, 1
        %s407 = smul.addr %s406, 8
        %s408 = scalar_lea.vmem [#allocation8], %s407
        %s409 = smul.u32 %s32, 8
        %s410 = ssub.s32 %s409, 1
        %p411 = scmp.gt.s32.totalorder %s410, 0
        %s412 = scalar_select %p411, %s410, 0
        %s413 = smul.u32 %s32, 8
        %s414 = sadd.s32 %s413, 8
        %p415 = scmp.lt.s32.totalorder %s414, 15
        %s416 = scalar_select %p415, %s414, 15
        %v418 = vld [vmem:[%s354] sm:$0xff]
        %v419 = vld [vmem:[%s362] sm:$0x1]
        %v420 = vld [vmem:[%s370] sm:$0x1]
        %v422 = vrot.slane %v418, 7
        %v425 = vlaneseq
        %v426 = vshrl.u32 %v425, 7
        %v427 = vsub.s32 0, %v426
        %v428 = vrot.slane %v420, %v427
        %vm430 = vcmask 1040384
        %v431 = vsel %vm430, %v419, %v422
        %v432 = vsel %vm430, %v422, %v428
        %v433 = vpack.c.bf16 %v432, %v431
        %v434 = vld [vmem:[%s3] sm:$0xf]
        %v435 = vld [vmem:[%s3 + $0x4] sm:$0xf]
        %v436 = vld [vmem:[%s3 + $0x8] sm:$0xf]
        %v437 = vld [vmem:[%s3 + $0xc] sm:$0xf]
        %v438 = vld [vmem:[%s3 + $0x10] sm:$0xf]
        %v439 = vld [vmem:[%s3 + $0x14] sm:$0xf]
        %v440 = vld [vmem:[%s3 + $0x18] sm:$0xf]
        %v441 = vld [vmem:[%s3 + $0x1c] sm:$0xf]
        %v442 = vld [vmem:[%s3 + $0x20] sm:$0xf]
        %v443 = vld [vmem:[%s3 + $0x24] sm:$0xf]
        %v444 = vld [vmem:[%s3 + $0x28] sm:$0xf]
        %v445 = vld [vmem:[%s3 + $0x2c] sm:$0xf]
        %v446 = vld [vmem:[%s3 + $0x30] sm:$0xf]
        %v447 = vld [vmem:[%s3 + $0x34] sm:$0xf]
        %v448 = vld [vmem:[%s3 + $0x38] sm:$0xf]
        %v449 = vld [vmem:[%s3 + $0x3c] sm:$0xf]
        %v450 = vld [vmem:[%s4] sm:$0x1]
        %v452 = vlaneseq
        %v453 = vshrl.u32 %v452, 7
        %v454 = vsub.s32 0, %v453
        %v455 = vrot.slane %v450, %v454
        %v473 = vunpack.c.l.b16 %v434
        %v474 = vunpack.c.l.b16 %v435
        %v475 = vunpack.c.l.b16 %v436
        %v476 = vunpack.c.l.b16 %v437
        %v477 = vunpack.c.l.b16 %v438
        %v478 = vunpack.c.l.b16 %v439
        %v479 = vunpack.c.l.b16 %v440
        %v480 = vunpack.c.l.b16 %v441
        %v481 = vunpack.c.l.b16 %v442
        %v482 = vunpack.c.l.b16 %v443
        %v483 = vunpack.c.l.b16 %v444
        %v484 = vunpack.c.l.b16 %v445
        %v485 = vunpack.c.l.b16 %v446
        %v486 = vunpack.c.l.b16 %v447
        %v487 = vunpack.c.l.b16 %v448
        %v488 = vunpack.c.l.b16 %v449
        %v489 = vpack.c.b16 %v474, %v473
        %v490 = vpack.c.b16 %v476, %v475
        %v491 = vpack.c.b16 %v478, %v477
        %v492 = vpack.c.b16 %v480, %v479
        %v493 = vpack.c.b16 %v482, %v481
        %v494 = vpack.c.b16 %v484, %v483
        %v495 = vpack.c.b16 %v486, %v485
        %v496 = vpack.c.b16 %v488, %v487
        %505 = vmatprep.subr.bf16.mxu0 0
        %506 = vmatpush1.bf16.msra.mxu0 %v496
        %507 = vmatprep.subr.bf16.mxu0 0
        %508 = vmatpush1.bf16.msra.mxu0 %v495
        %509 = vmatprep.subr.bf16.mxu0 0
        %510 = vmatpush1.bf16.msra.mxu0 %v494
        %511 = vmatprep.subr.bf16.mxu0 0
        %512 = vmatpush1.bf16.msra.mxu0 %v493
        %513 = vmatprep.subr.bf16.mxu0 0
        %514 = vmatpush1.bf16.msra.mxu0 %v492
        %515 = vmatprep.subr.bf16.mxu0 0
        %516 = vmatpush1.bf16.msra.mxu0 %v491
        %517 = vmatprep.subr.bf16.mxu0 0
        %518 = vmatpush1.bf16.msra.mxu0 %v490
        %519 = vmatprep.subr.bf16.mxu0 0
        %520 = vmatpush1.bf16.msra.mxu0 %v489
        %521 = vmatprep.subr.bf16.mxu0 0
        %522 = vmatpush2.bf16.msra.mxu0 0
        %523 = vmatprep.subr.bf16.mxu0 0
        %524 = vmatpush2.bf16.msra.mxu0 0
        %525 = vmatprep.subr.bf16.mxu0 0
        %526 = vmatpush2.bf16.msra.mxu0 0
        %527 = vmatprep.subr.bf16.mxu0 0
        %528 = vmatpush2.bf16.msra.mxu0 0
        %529 = vmatprep.subr.bf16.mxu0 0
        %530 = vmatpush2.bf16.msra.mxu0 0
        %531 = vmatprep.subr.bf16.mxu0 0
        %532 = vmatpush2.bf16.msra.mxu0 0
        %533 = vmatprep.subr.bf16.mxu0 0
        %534 = vmatpush2.bf16.msra.mxu0 0
        %535 = vmatprep.subr.bf16.mxu0 0
        %536 = vmatpush2.bf16.msra.mxu0 0
        %537 = vmatprep.mubr.bf16.mxu0 0
        %538 = vmatmul.mubr.bf16.gmra.mxu0 %v433
        %v539 = vpop.f32.mrf.mxu0
        %v540 = vadd.f32 %v455, %v539
        %v541 = vpop.f32.mrf.mxu0
        %v542 = vpop.f32.mrf.mxu0
        %v543 = vadd.f32 %v455, %v542
        %v544 = vpop.f32.mrf.mxu0
        %545 = vdwg.mxu0
        %v546 = vmax.f32 %v540, 0.0
        %v547 = vmax.f32 %v543, 0.0
        %v548 = vlaneseq
        %v549 = vshrl.u32 %v548, 7
        %v550 = vadd.s32 %v549, 8
        %vm551 = vcmp.eq.s32.totalorder %v549, 0
        %vm552 = vcmp.eq.s32.totalorder %v550, 0
        %p553 = scmp.eq.s32.totalorder %s32, 0
        %s554 = scalar_select %p553, 1, 0
        %v555 = vstv %s554
        %vm556 = vcmp.eq.s32.totalorder %v555, 1
        %vm557 = vmand %vm551, %vm556
        %vm558 = vmand %vm552, %vm556
        %vm559 = vcmp.eq.s32.totalorder %v549, 9
        %vm560 = vcmp.eq.s32.totalorder %v550, 9
        %p561 = scmp.eq.s32.totalorder %s32, 1
        %s562 = scalar_select %p561, 1, 0
        %v563 = vstv %s562
        %vm564 = vcmp.eq.s32.totalorder %v563, 1
        %vm565 = vmand %vm559, %vm564
        %vm566 = vmand %vm560, %vm564
        %vm567 = vmor %vm557, %vm565
        %vm568 = vmor %vm558, %vm566
        %v569 = vsel %vm567, 1, 0
        %v570 = vsel %vm568, 1, 0
        %vm571 = vcmp.eq.s32.totalorder %v569, 1
        %vm572 = vcmp.eq.s32.totalorder %v570, 1
        %v573 = vsel %vm571, 0.0, %v546
        %v574 = vsel %vm572, 0.0, %v547
        %v575 = vpack.c.bf16 %v574, %v573
        %v576 = vld [vmem:[%s5] sm:$0xf]
        %v577 = vld [vmem:[%s5 + $0x4] sm:$0xf]
        %v578 = vld [vmem:[%s5 + $0x8] sm:$0xf]
        %v579 = vld [vmem:[%s5 + $0xc] sm:$0xf]
        %v580 = vld [vmem:[%s5 + $0x10] sm:$0xf]
        %v581 = vld [vmem:[%s5 + $0x14] sm:$0xf]
        %v582 = vld [vmem:[%s5 + $0x18] sm:$0xf]
        %v583 = vld [vmem:[%s5 + $0x1c] sm:$0xf]
        %v584 = vld [vmem:[%s5 + $0x20] sm:$0xf]
        %s585 = scalar_lea.vmem %s5, 36
        %v586 = vld [vmem:[%s585] sm:$0xf]
        %v587 = vld [vmem:[%s585 + $0x4] sm:$0xf]
        %v588 = vld [vmem:[%s585 + $0x8] sm:$0xf]
        %v589 = vld [vmem:[%s585 + $0xc] sm:$0xf]
        %v590 = vld [vmem:[%s585 + $0x10] sm:$0xf]
        %v591 = vld [vmem:[%s585 + $0x14] sm:$0xf]
        %v592 = vld [vmem:[%s585 + $0x18] sm:$0xf]
        %v593 = vld [vmem:[%s585 + $0x1c] sm:$0xf]
        %v594 = vld [vmem:[%s585 + $0x20] sm:$0xf]
        %v596 = vshrl.u32 %v575, 16
        %v598 = vshll.u32 %v575, 16
        %v600 = vrot.slane %v598, 1
        %v601 = vor.u32 %v596, %v600
        %v611 = vunpack.c.l.b16 %v586
        %v612 = vunpack.c.l.b16 %v587
        %v613 = vunpack.c.l.b16 %v588
        %v614 = vunpack.c.l.b16 %v589
        %v615 = vunpack.c.l.b16 %v590
        %v616 = vunpack.c.l.b16 %v591
        %v617 = vunpack.c.l.b16 %v592
        %v618 = vunpack.c.l.b16 %v593
        %v619 = vunpack.c.l.b16 %v594
        %v620 = vpack.c.b16 %v612, %v611
        %v621 = vpack.c.b16 %v614, %v613
        %v622 = vpack.c.b16 %v616, %v615
        %v623 = vpack.c.b16 %v618, %v617
        %v624 = vpack.c.b16 %v619, %v619
        %vm629 = vcmask 588800
        %v631 = vsel %vm629, %v601, 0
        %vm633 = vcmask 1043456
        %v635 = vsel %vm633, %v624, 0
        %637 = vmatprep.subr.bf16.mxu0 0
        %638 = vmatpush1.bf16.msra.mxu0 0
        %639 = vmatprep.subr.bf16.mxu0 0
        %640 = vmatpush1.bf16.msra.mxu0 0
        %641 = vmatprep.subr.bf16.mxu0 0
        %642 = vmatpush1.bf16.msra.mxu0 0
        %643 = vmatprep.subr.bf16.mxu0 0
        %644 = vmatpush1.bf16.msra.mxu0 %v635
        %645 = vmatprep.subr.bf16.mxu0 0
        %646 = vmatpush1.bf16.msra.mxu0 %v623
        %647 = vmatprep.subr.bf16.mxu0 0
        %648 = vmatpush1.bf16.msra.mxu0 %v622
        %649 = vmatprep.subr.bf16.mxu0 0
        %650 = vmatpush1.bf16.msra.mxu0 %v621
        %651 = vmatprep.subr.bf16.mxu0 0
        %652 = vmatpush1.bf16.msra.mxu0 %v620
        %653 = vmatprep.subr.bf16.mxu0 0
        %654 = vmatpush2.bf16.msra.mxu0 0
        %655 = vmatprep.subr.bf16.mxu0 0
        %656 = vmatpush2.bf16.msra.mxu0 0
        %657 = vmatprep.subr.bf16.mxu0 0
        %658 = vmatpush2.bf16.msra.mxu0 0
        %659 = vmatprep.subr.bf16.mxu0 0
        %660 = vmatpush2.bf16.msra.mxu0 0
        %661 = vmatprep.subr.bf16.mxu0 0
        %662 = vmatpush2.bf16.msra.mxu0 0
        %663 = vmatprep.subr.bf16.mxu0 0
        %664 = vmatpush2.bf16.msra.mxu0 0
        %665 = vmatprep.subr.bf16.mxu0 0
        %666 = vmatpush2.bf16.msra.mxu0 0
        %667 = vmatprep.subr.bf16.mxu0 0
        %668 = vmatpush2.bf16.msra.mxu0 0
        %669 = vmatprep.mubr.bf16.mxu0 0
        %670 = vmatmul.mubr.bf16.gmra.mxu0 %v631
        %v671 = vpop.f32.mrf.mxu0
        %v672 = vadd.f32 0.0, %v671
        %v673 = vpop.f32.mrf.mxu0
        %v674 = vpop.f32.mrf.mxu0
        %v675 = vpop.f32.mrf.mxu0
        %676 = vdwg.mxu0
        %v686 = vunpack.c.l.b16 %v576
        %v687 = vunpack.c.l.b16 %v577
        %v688 = vunpack.c.l.b16 %v578
        %v689 = vunpack.c.l.b16 %v579
        %v690 = vunpack.c.l.b16 %v580
        %v691 = vunpack.c.l.b16 %v581
        %v692 = vunpack.c.l.b16 %v582
        %v693 = vunpack.c.l.b16 %v583
        %v694 = vunpack.c.l.b16 %v584
        %v695 = vpack.c.b16 %v687, %v686
        %v696 = vpack.c.b16 %v689, %v688
        %v697 = vpack.c.b16 %v691, %v690
        %v698 = vpack.c.b16 %v693, %v692
        %v699 = vpack.c.b16 %v694, %v694
        %v704 = vsel %vm629, %v575, 0
        %v707 = vsel %vm633, %v699, 0
        %709 = vmatprep.subr.bf16.mxu0 0
        %710 = vmatpush1.bf16.msra.mxu0 0
        %711 = vmatprep.subr.bf16.mxu0 0
        %712 = vmatpush1.bf16.msra.mxu0 0
        %713 = vmatprep.subr.bf16.mxu0 0
        %714 = vmatpush1.bf16.msra.mxu0 0
        %715 = vmatprep.subr.bf16.mxu0 0
        %716 = vmatpush1.bf16.msra.mxu0 %v707
        %717 = vmatprep.subr.bf16.mxu0 0
        %718 = vmatpush1.bf16.msra.mxu0 %v698
        %719 = vmatprep.subr.bf16.mxu0 0
        %720 = vmatpush1.bf16.msra.mxu0 %v697
        %721 = vmatprep.subr.bf16.mxu0 0
        %722 = vmatpush1.bf16.msra.mxu0 %v696
        %723 = vmatprep.subr.bf16.mxu0 0
        %724 = vmatpush1.bf16.msra.mxu0 %v695
        %725 = vmatprep.subr.bf16.mxu0 0
        %726 = vmatpush2.bf16.msra.mxu0 0
        %727 = vmatprep.subr.bf16.mxu0 0
        %728 = vmatpush2.bf16.msra.mxu0 0
        %729 = vmatprep.subr.bf16.mxu0 0
        %730 = vmatpush2.bf16.msra.mxu0 0
        %731 = vmatprep.subr.bf16.mxu0 0
        %732 = vmatpush2.bf16.msra.mxu0 0
        %733 = vmatprep.subr.bf16.mxu0 0
        %734 = vmatpush2.bf16.msra.mxu0 0
        %735 = vmatprep.subr.bf16.mxu0 0
        %736 = vmatpush2.bf16.msra.mxu0 0
        %737 = vmatprep.subr.bf16.mxu0 0
        %738 = vmatpush2.bf16.msra.mxu0 0
        %739 = vmatprep.subr.bf16.mxu0 0
        %740 = vmatpush2.bf16.msra.mxu0 0
        %741 = vmatprep.mubr.bf16.mxu0 0
        %742 = vmatmul.mubr.bf16.gmra.mxu0 %v704
        %v743 = vpop.f32.mrf.mxu0
        %v744 = vadd.f32 %v672, %v743
        %v745 = vpop.f32.mrf.mxu0
        %v746 = vpop.f32.mrf.mxu0
        %v747 = vpop.f32.mrf.mxu0
        %748 = vdwg.mxu0
        %s749 = scalar_lea.vmem %s5, 72
        %v750 = vld [vmem:[%s749] sm:$0xf]
        %v751 = vld [vmem:[%s749 + $0x4] sm:$0xf]
        %v752 = vld [vmem:[%s749 + $0x8] sm:$0xf]
        %v753 = vld [vmem:[%s749 + $0xc] sm:$0xf]
        %v754 = vld [vmem:[%s749 + $0x10] sm:$0xf]
        %v755 = vld [vmem:[%s749 + $0x14] sm:$0xf]
        %v756 = vld [vmem:[%s749 + $0x18] sm:$0xf]
        %v757 = vld [vmem:[%s749 + $0x1c] sm:$0xf]
        %v758 = vld [vmem:[%s749 + $0x20] sm:$0xf]
        %v760 = vrot.slane %v575, 1
        %v770 = vunpack.c.l.b16 %v750
        %v771 = vunpack.c.l.b16 %v751
        %v772 = vunpack.c.l.b16 %v752
        %v773 = vunpack.c.l.b16 %v753
        %v774 = vunpack.c.l.b16 %v754
        %v775 = vunpack.c.l.b16 %v755
        %v776 = vunpack.c.l.b16 %v756
        %v777 = vunpack.c.l.b16 %v757
        %v778 = vunpack.c.l.b16 %v758
        %v779 = vpack.c.b16 %v771, %v770
        %v780 = vpack.c.b16 %v773, %v772
        %v781 = vpack.c.b16 %v775, %v774
        %v782 = vpack.c.b16 %v777, %v776
        %v783 = vpack.c.b16 %v778, %v778
        %v789 = vsel %vm629, %v760, 0
        %v792 = vsel %vm633, %v783, 0
        %794 = vmatprep.subr.bf16.mxu0 0
        %795 = vmatpush1.bf16.msra.mxu0 0
        %796 = vmatprep.subr.bf16.mxu0 0
        %797 = vmatpush1.bf16.msra.mxu0 0
        %798 = vmatprep.subr.bf16.mxu0 0
        %799 = vmatpush1.bf16.msra.mxu0 0
        %800 = vmatprep.subr.bf16.mxu0 0
        %801 = vmatpush1.bf16.msra.mxu0 %v792
        %802 = vmatprep.subr.bf16.mxu0 0
        %803 = vmatpush1.bf16.msra.mxu0 %v782
        %804 = vmatprep.subr.bf16.mxu0 0
        %805 = vmatpush1.bf16.msra.mxu0 %v781
        %806 = vmatprep.subr.bf16.mxu0 0
        %807 = vmatpush1.bf16.msra.mxu0 %v780
        %808 = vmatprep.subr.bf16.mxu0 0
        %809 = vmatpush1.bf16.msra.mxu0 %v779
        %810 = vmatprep.subr.bf16.mxu0 0
        %811 = vmatpush2.bf16.msra.mxu0 0
        %812 = vmatprep.subr.bf16.mxu0 0
        %813 = vmatpush2.bf16.msra.mxu0 0
        %814 = vmatprep.subr.bf16.mxu0 0
        %815 = vmatpush2.bf16.msra.mxu0 0
        %816 = vmatprep.subr.bf16.mxu0 0
        %817 = vmatpush2.bf16.msra.mxu0 0
        %818 = vmatprep.subr.bf16.mxu0 0
        %819 = vmatpush2.bf16.msra.mxu0 0
        %820 = vmatprep.subr.bf16.mxu0 0
        %821 = vmatpush2.bf16.msra.mxu0 0
        %822 = vmatprep.subr.bf16.mxu0 0
        %823 = vmatpush2.bf16.msra.mxu0 0
        %824 = vmatprep.subr.bf16.mxu0 0
        %825 = vmatpush2.bf16.msra.mxu0 0
        %826 = vmatprep.mubr.bf16.mxu0 0
        %827 = vmatmul.mubr.bf16.gmra.mxu0 %v789
        %v828 = vpop.f32.mrf.mxu0
        %v829 = vadd.f32 0.0, %v828
        %v830 = vpop.f32.mrf.mxu0
        %v831 = vpop.f32.mrf.mxu0
        %v832 = vpop.f32.mrf.mxu0
        %833 = vdwg.mxu0
        %v834 = vadd.f32 %v744, %v829
        %v835 = vld [vmem:[%s6] sm:$0x1]
        %v837 = vlaneseq
        %v838 = vshrl.u32 %v837, 7
        %v839 = vsub.s32 0, %v838
        %v840 = vrot.slane %v835, %v839
        %v842 = vadd.f32 %v834, %v840
        %v843 = vmax.f32 %v842, 0.0
        %v844 = vadd.f32 %v418, %v843
        %845 = vst [vmem:[%s408] sm:$0xff] %v844
        %s846 = sand.u32 %s233, 1
        %s847 = scalar_lea.sflag [#allocation4], %s846
        %s848 = sand.u32 %s233, 1
        %s849 = smul.addr %s848, 8
        %s850 = scalar_lea.vmem [#allocation8], %s849
        // Predicated region
        $region61: #{tpu_custom_call.1} parent=47 // pred_check
          %p851 = pneg %p243
        $region62: #{tpu_custom_call.1} parent=47 // pred_check_branch
          %853 = sbr.rel (%p851) target = $region64
        $region63: #{tpu_custom_call.1} parent=47 // pred_region
          %s855 = ssub.s32 128, 128
          %856 = vsyncadd %s847, %s855
          %s857 = smul.addr %s31, 2
          %s858 = sadd.s32 %s32, %s857
          %s859 = smul.addr %s858, 128
          %s860 = scalar_lea.hbm %s7, %s859
          %s862 = sshll.u32 %s850, 4
          %s863 = int_to_ptr.vmem [resolvable:$true] %s862
          %865 = dma.vmem_to_hbm [thread:$0]  %s863, 128, %s860, %s847
        $region64: #{tpu_custom_call.1} parent=47 // pred_fallthru
          _
      $region48: #{tpu_custom_call.1} parent=5 // pred_fallthru
        _
      %p866 = scmp.le.s32.totalorder 2, %s22
      // Predicated region
      $region65: #{tpu_custom_call.1} parent=5 // pred_check
        %p867 = pneg %p866
      $region66: #{tpu_custom_call.1} parent=5 // pred_check_branch
        %869 = sbr.rel (%p867) target = $region68
      $region67: #{tpu_custom_call.1} parent=5 // pred_region
        %s870 = ssub.s32 %s22, 2
        // Predicated region
        $region69: #{tpu_custom_call.1} parent=67 // pred_check
          %p871 = pneg %p249
        $region70: #{tpu_custom_call.1} parent=67 // pred_check_branch
          %873 = sbr.rel (%p871) target = $region72
        $region71: #{tpu_custom_call.1} parent=67 // pred_region
          %s874 = sand.u32 %s234, 1
          %s875 = scalar_lea.sflag [#allocation4], %s874
          %s876 = sand.u32 %s234, 1
          %s877 = smul.addr %s876, 8
          %s878 = scalar_lea.vmem [#allocation8], %s877
          %879 = dma.done %s875, 128
        $region72: #{tpu_custom_call.1} parent=67 // pred_fallthru
          _
      $region68: #{tpu_custom_call.1} parent=5 // pred_fallthru
        _
    $region6: #{tpu_custom_call.1} parent=1 // loop_footer
      %s26 = sadd.s32 1, %s22
    $region7: #{tpu_custom_call.1} parent=1 // loop_footer_branch
      %21 = sbr.rel target = $region3
    $region8: #{tpu_custom_call.1} parent=1 // loop_exit
      _
    %880 = vsyncpa [#allocation3], 1
    %s881 = scalar_lea.sflag [#allocation3], 1
    %882 = vsyncpa %s881, 1
    %883 = vsyncpa [#allocation6], 1
    %s884 = scalar_lea.sflag [#allocation6], 1
    %885 = vsyncpa %s884, 1
    %886 = vsyncpa [#allocation4], 1
    %s887 = scalar_lea.sflag [#allocation4], 1
    %888 = vsyncpa %s887, 1

</llo_original>
